<compile_context>
chip_gen: v5e
topology: v5e:2x2
jax: 0.10.0
libtpu: 0.0.40
codegen_flags: <defaults>
</compile_context>

<pallas_src>
import math

import numpy as np
import jax
import jax.numpy as jnp
from jax.experimental import pallas as pl
from jax.experimental.pallas import tpu as pltpu

KERNEL_SIZE = 25                      # fixed in Model.__init__
PAD = (KERNEL_SIZE - 1) // 2          # replicate padding on both ends (=12)


def _round_up(x, m):
    return ((x + m - 1) // m) * m


def _pick_c_tile(C):
    """Channel tile: full C when small, else a sublane-aligned divisor."""
    if C <= 256:
        return C
    for t in (256, 128, 64, 32, 16, 8):
        if C % t == 0:
            return t
    return C


def _build_moving_avg_matrix(L):
    """A[l, t] = weight of x[:, l] in the k=25 replicate-padded moving average
    at output position t, so that trend = x_cl @ A  (x_cl is [C, L])."""
    A = np.zeros((L, L), np.float32)
    w = 1.0 / KERNEL_SIZE
    for t in range(L):
        for j in range(KERNEL_SIZE):
            src = min(max(t + j - PAD, 0), L - 1)
            A[src, t] += w
    return A


# ----------------------------------------------------------------------------
# Kernel A: cluster-assignment probabilities (eval path only).
#   inputs : x [B, C, L], WaT [L, d_ff], ba [1, d_ff], cluster_emb [K, d_ff]
#   output : prob [C, K]  (softmax over clusters, mean over batch)
# Single grid step processes the whole (small) batch; B is unrolled statically.
# ----------------------------------------------------------------------------
def _assign_prob_kernel(x_ref, waT_ref, ba_ref, ce_ref, prob_ref):
    B = x_ref.shape[0]
    ce = ce_ref[...]                                               # [K, d_ff]
    inv_sqrt_d = 1.0 / math.sqrt(ce.shape[-1])

    acc = jnp.zeros(prob_ref.shape, jnp.float32)
    for b in range(B):                                             # B is small
        x_b = x_ref[b]                                             # [C, L]
        x_emb = jnp.dot(x_b, waT_ref[...],
                        preferred_element_type=jnp.float32) + ba_ref[...]
        # channel -> cluster logits:  x_emb @ ce^T / sqrt(d_ff)
        logits = jax.lax.dot_general(
            x_emb, ce, dimension_numbers=(((1,), (1,)), ((), ())),
            preferred_element_type=jnp.float32) * inv_sqrt_d       # [C, K]
        m = jnp.max(logits, axis=-1, keepdims=True)
        e = jnp.exp(logits - m)
        denom = jnp.sum(e, axis=-1, keepdims=True)
        acc = acc + e * pl.reciprocal(denom, approx=True)          # EUP slot
    prob_ref[...] = acc * (1.0 / B)


def cluster_assign_prob(x_bcl, waT, ba, cluster_emb):
    B, C, L = x_bcl.shape
    d_ff = waT.shape[1]
    K = cluster_emb.shape[0]
    return pl.pallas_call(
        _assign_prob_kernel,
        out_shape=jax.ShapeDtypeStruct((C, K), jnp.float32),
        grid_spec=pltpu.PrefetchScalarGridSpec(
            num_scalar_prefetch=0,
            grid=(1,),
            in_specs=[pl.BlockSpec((B, C, L), lambda i: (0, 0, 0)),
                      pl.BlockSpec((L, d_ff), lambda i: (0, 0)),
                      pl.BlockSpec((1, d_ff), lambda i: (0, 0)),
                      pl.BlockSpec((K, d_ff), lambda i: (0, 0))],
            out_specs=pl.BlockSpec((C, K), lambda i: (0, 0))),
        compiler_params=pltpu.CompilerParams(
            dimension_semantics=("arbitrary",)),
    )(x_bcl, waT, ba, cluster_emb)


# ----------------------------------------------------------------------------
# Kernel B: fused decomposition + cluster-wise linear heads.
#   inputs : x [B, C, L], M_stack [L, K*P_pad], b_stack [1, K*P_pad],
#            prob [C, K]
#   output : [B, C, P_pad]   (lane-dense; valid lanes are [:, :, :P])
# One lane-dense matmul per (batch, channel-tile) block, then a K-term
# probability-weighted mixture of the 128-aligned column groups.
# ----------------------------------------------------------------------------
def _cluster_heads_kernel(x_ref, m_ref, b_ref, prob_ref, out_ref):
    x = x_ref[0].astype(m_ref.dtype)                 # [c_tile, L]
    y = jnp.dot(x, m_ref[...],
                preferred_element_type=jnp.float32)  # [c_tile, K*P_pad]
    y = y + b_ref[...]
    prob = prob_ref[...]                             # [c_tile, K]
    K = prob.shape[1]
    P_pad = out_ref.shape[2]
    out = prob[:, 0:1] * y[:, 0:P_pad]
    for k in range(1, K):                            # K is small; 128-aligned
        out = out + prob[:, k:k + 1] * y[:, k * P_pad:(k + 1) * P_pad]
    out_ref[0] = out.astype(out_ref.dtype)


def cluster_heads(x_bcl, m_stack, b_stack, prob, p_pad):
    B, C, L = x_bcl.shape
    KPpad = m_stack.shape[1]
    K = prob.shape[1]
    assert KPpad == K * p_pad
    c_tile = _pick_c_tile(C)
    n_ct = C // c_tile
    return pl.pallas_call(
        _cluster_heads_kernel,
        out_shape=jax.ShapeDtypeStruct((B, C, p_pad), jnp.float32),
        grid_spec=pltpu.PrefetchScalarGridSpec(
            num_scalar_prefetch=0,
            grid=(B, n_ct),
            in_specs=[pl.BlockSpec((1, c_tile, L), lambda b, c: (b, c, 0)),
                      pl.BlockSpec((L, KPpad), lambda b, c: (0, 0)),
                      pl.BlockSpec((1, KPpad), lambda b, c: (0, 0)),
                      pl.BlockSpec((c_tile, K), lambda b, c: (c, 0))],
            out_specs=pl.BlockSpec((1, c_tile, p_pad), lambda b, c: (b, c, 0))),
        compiler_params=pltpu.CompilerParams(
            dimension_semantics=("parallel", "parallel")),
    )(x_bcl, m_stack, b_stack, prob)


# ----------------------------------------------------------------------------
# Auxiliary similarity loss (scalar; tiny CxC / CxK math -> plain JAX glue).
# Matches the reference module EXACTLY, including the fact that `entropy` is
# added twice (once inside `loss`, once at `return loss + entropy`).
# ----------------------------------------------------------------------------
def similarity_loss_batch(batch_x, cluster_prob, key):
    # batch_x: [B, L, C]
    time_diffs = batch_x[:, 1:, :] - batch_x[:, :-1, :]
    channel_repr = time_diffs.mean(axis=(0, 1))                     # [C]
    # torch .std() is the unbiased estimator -> ddof=1
    channel_repr = (channel_repr - channel_repr.mean()) / (
        jnp.std(channel_repr, ddof=1) + 1e-6)
    diff = channel_repr[None, :] - channel_repr[:, None]
    sq = diff ** 2
    C = sq.shape[0]
    # off-diagonal extraction (static-shape trick)
    off = sq.reshape(-1)[:-1].reshape(C - 1, C + 1)[:, 1:].reshape(-1)
    n_off = off.shape[0]
    # torch.median returns the lower middle element for even counts
    med = jnp.sort(off)[(n_off - 1) // 2]
    sigma = jnp.maximum(jnp.sqrt(med), 1e-5)
    sim = jnp.exp(-sq / (2.0 * sigma ** 2))

    # concrete Bernoulli relaxation of the membership
    eps = 1e-10
    noise = jax.random.uniform(key, cluster_prob.shape,
                               minval=eps, maxval=1.0 - eps)
    noise = jnp.log(noise) - jnp.log(1.0 - noise)
    logit = jnp.log(cluster_prob + eps) - jnp.log(1.0 - cluster_prob + eps)
    membership = jax.nn.sigmoid((logit + noise) / 0.07)

    sim_proj = membership.T @ sim @ membership
    mem_dot = membership @ membership.T
    orth_loss = 1.0 - mem_dot
    n_vars = membership.shape[0]
    entropy = (-cluster_prob * jnp.log(cluster_prob + 1e-15)).sum(-1).mean()
    loss = (-jnp.trace(sim_proj) / n_vars
            + jnp.trace(orth_loss @ sim) / n_vars ** 2
            + entropy)
    return loss + entropy


# ----------------------------------------------------------------------------
# Model wrapper (parameter container + forward)
# ----------------------------------------------------------------------------
class CCMModel:
    def __init__(self, seq_len, pred_len, enc_in, n_cluster, d_ff, key,
                 use_bf16_matmul=False):
        self.seq_len = seq_len
        self.pred_len = pred_len
        self.channels = enc_in
        self.n_cluster = n_cluster
        self.d_ff = d_ff
        self.pred_len_pad = _round_up(pred_len, 128)   # lane-dense output

        ks = jax.random.split(key, 7)
        s_lin = 1.0 / math.sqrt(seq_len)
        # cluster-wise linear heads (stored pre-transposed: [K, L, P])
        WsT = jax.random.uniform(ks[0], (n_cluster, seq_len, pred_len),
                                 jnp.float32, -s_lin, s_lin)
        bs = jax.random.uniform(ks[1], (n_cluster, pred_len),
                                jnp.float32, -s_lin, s_lin)
        WtT = jax.random.uniform(ks[2], (n_cluster, seq_len, pred_len),
                                 jnp.float32, -s_lin, s_lin)
        bt = jax.random.uniform(ks[3], (n_cluster, pred_len),
                                jnp.float32, -s_lin, s_lin)
        # cluster assigner: Linear(seq_len -> d_ff), stored transposed [L, d_ff]
        self.WaT = jax.random.uniform(ks[4], (seq_len, d_ff),
                                      jnp.float32, -s_lin, s_lin)
        self.ba = jax.random.uniform(ks[5], (1, d_ff),
                                     jnp.float32, -s_lin, s_lin)
        bound = math.sqrt(6.0 / d_ff)
        self.cluster_emb = jax.random.uniform(ks[6], (n_cluster, d_ff),
                                              jnp.float32, -bound, bound)

        # --- fold moving-average + seasonal/trend + both heads into one weight
        A = jnp.asarray(_build_moving_avg_matrix(seq_len))          # [L, L]
        M = WsT + jnp.einsum('lm,kmp->klp', A, WtT - WsT)            # [K, L, P]
        P_pad = self.pred_len_pad
        Mp = jnp.pad(M, ((0, 0), (0, 0), (0, P_pad - pred_len)))
        # [L, K*P_pad], lane-dense, 128-aligned per-cluster column groups
        self.M_stack = jnp.transpose(Mp, (1, 0, 2)).reshape(
            seq_len, n_cluster * P_pad)
        b_sum = jnp.pad(bs + bt, ((0, 0), (0, P_pad - pred_len)))
        self.b_stack = b_sum.reshape(1, n_cluster * P_pad)

        if use_bf16_matmul:
            # bf16 MXU path (v6e/v7x); accumulation stays f32 in-kernel.
            self.M_stack = self.M_stack.astype(jnp.bfloat16)

    def __call__(self, x, x_mark_enc, x_dec, x_mark_dec, *, loss_key):
        # x: [B, seq_len, channels]   (x_mark_enc / x_dec / x_mark_dec unused,
        # exactly like the PyTorch forward)
        x = x.astype(jnp.float32)
        x_bcl = jnp.transpose(x, (0, 2, 1))                          # [B, C, L]

        # --- channel -> cluster assignment (Pallas kernel A, eval path) ---
        cluster_prob = cluster_assign_prob(
            x_bcl, self.WaT, self.ba, self.cluster_emb)
        # TODO(synk): training-mode cross-attention refresh of cluster_emb is
        # skipped; the PyTorch eval forward discards it anyway.

        # --- fused decomposition + cluster-wise heads (Pallas kernel B) ---
        out_pad = cluster_heads(x_bcl, self.M_stack, self.b_stack,
                                cluster_prob, self.pred_len_pad)     # [B,C,Ppad]
        out_bcp = out_pad[:, :, :self.pred_len]                      # [B, C, P]

        # --- auxiliary similarity loss ---
        loss_aux = similarity_loss_batch(x, cluster_prob, loss_key)

        return jnp.transpose(out_bcp, (0, 2, 1)), loss_aux           # [B, P, C]


# ----------------------------------------------------------------------------
if __name__ == "__main__":
    B, L, C = 2, 32, 8          # batch, seq_len, channels (enc_in)
    P, K, DFF = 16, 4, 32       # pred_len, n_cluster, d_ff

    key = jax.random.PRNGKey(0)
    k_param, k_x, k_noise = jax.random.split(key, 3)

    model = CCMModel(seq_len=L, pred_len=P, enc_in=C,
                     n_cluster=K, d_ff=DFF, key=k_param)

    x = jax.random.normal(k_x, (B, L, C), jnp.float32)
    x_mark_enc = jnp.zeros((B, L, 4), jnp.float32)      # unused by forward
    x_dec = jnp.zeros((B, P, C), jnp.float32)           # unused by forward
    x_mark_dec = jnp.zeros((B, P, 4), jnp.float32)      # unused by forward

    out, loss_aux = model(x, x_mark_enc, x_dec, x_mark_dec, loss_key=k_noise)
    out = jax.block_until_ready(out)
    loss_aux = jax.block_until_ready(loss_aux)

    assert out.shape == (B, P, C), out.shape
    assert jnp.isfinite(out).all() and jnp.isfinite(loss_aux)
    print("KERNEL_OK")
</pallas_src>

<mosaic_0001>
module attributes {stable_mosaic.version = 11 : i64} {
  func.func @_assign_prob_kernel(%arg0: i32, %arg1: memref<2x8x32xf32, #tpu.memory_space<vmem>>, %arg2: memref<32x32xf32, #tpu.memory_space<vmem>>, %arg3: memref<1x32xf32, #tpu.memory_space<vmem>>, %arg4: memref<4x32xf32, #tpu.memory_space<vmem>>, %arg5: memref<8x4xf32, #tpu.memory_space<vmem>>) attributes {dimension_semantics = [#tpu.dimension_semantics<arbitrary>], iteration_bounds = array<i64: 1>, scalar_prefetch = 0 : i64, scratch_operands = 0 : i64, tpu.core_type = #tpu.core_type<tc>, window_params = [{pipeline_mode = #tpu.pipeline_mode<synchronous>, transform_indices = @transform_0, window_bounds = array<i64: 2, 8, 32>}, {pipeline_mode = #tpu.pipeline_mode<synchronous>, transform_indices = @transform_1, window_bounds = array<i64: 32, 32>}, {pipeline_mode = #tpu.pipeline_mode<synchronous>, transform_indices = @transform_2, window_bounds = array<i64: 1, 32>}, {pipeline_mode = #tpu.pipeline_mode<synchronous>, transform_indices = @transform_3, window_bounds = array<i64: 4, 32>}, {pipeline_mode = #tpu.pipeline_mode<synchronous>, transform_indices = @transform_4, window_bounds = array<i64: 8, 4>}]} {
    %c0 = arith.constant 0 : index
    %c0_0 = arith.constant 0 : index
    %0 = vector.load %arg4[%c0, %c0_0] : memref<4x32xf32, #tpu.memory_space<vmem>>, vector<4x32xf32>
    %cst = arith.constant 0.000000e+00 : f32
    %1 = vector.broadcast %cst : f32 to vector<8x4xf32>
    %c0_1 = arith.constant 0 : index
    %c0_2 = arith.constant 0 : index
    %c0_3 = arith.constant 0 : index
    %2 = vector.load %arg1[%c0_1, %c0_2, %c0_3] : memref<2x8x32xf32, #tpu.memory_space<vmem>>, vector<1x8x32xf32>
    %3 = vector.shape_cast %2 : vector<1x8x32xf32> to vector<8x32xf32>
    %c0_4 = arith.constant 0 : index
    %c0_5 = arith.constant 0 : index
    %4 = vector.load %arg2[%c0_4, %c0_5] : memref<32x32xf32, #tpu.memory_space<vmem>>, vector<32x32xf32>
    %cst_6 = arith.constant dense<0.000000e+00> : vector<8x32xf32>
    %5 = tpu.matmul %3, %4, %cst_6 {dimension_numbers = #tpu.dot_dimension_numbers<[1], [0], [0], [1], [0, 0, 1, 1], [], []>} : vector<8x32xf32>, vector<32x32xf32>, vector<8x32xf32> -> vector<8x32xf32>
    %c0_7 = arith.constant 0 : index
    %c0_8 = arith.constant 0 : index
    %6 = vector.load %arg3[%c0_7, %c0_8] : memref<1x32xf32, #tpu.memory_space<vmem>>, vector<1x32xf32>
    %7 = vector.broadcast %6 : vector<1x32xf32> to vector<8x32xf32>
    %8 = arith.addf %5, %7 : vector<8x32xf32>
    %cst_9 = arith.constant dense<0.000000e+00> : vector<8x4xf32>
    %9 = tpu.matmul %8, %0, %cst_9 {dimension_numbers = #tpu.dot_dimension_numbers<[1], [1], [0], [0], [0, 0, 1, 0], [], []>} : vector<8x32xf32>, vector<4x32xf32>, vector<8x4xf32> -> vector<8x4xf32>
    %cst_10 = arith.constant 0.176776692 : f32
    %10 = vector.broadcast %cst_10 : f32 to vector<8x4xf32>
    %11 = arith.mulf %9, %10 : vector<8x4xf32>
    %cst_11 = arith.constant dense<0xFF800000> : vector<8xf32>
    %12 = vector.multi_reduction <maximumf>, %11, %cst_11 [1] : vector<8x4xf32> to vector<8xf32>
    %13 = vector.shape_cast %12 : vector<8xf32> to vector<8x1xf32>
    %14 = vector.broadcast %13 : vector<8x1xf32> to vector<8x4xf32>
    %15 = arith.subf %11, %14 : vector<8x4xf32>
    %16 = math.exp %15 : vector<8x4xf32>
    %cst_12 = arith.constant dense<0.000000e+00> : vector<8xf32>
    %17 = vector.multi_reduction <add>, %16, %cst_12 [1] : vector<8x4xf32> to vector<8xf32>
    %18 = vector.shape_cast %17 : vector<8xf32> to vector<8x1xf32>
    %19 = tpu.reciprocal %18 {approx = true} : vector<8x1xf32> -> vector<8x1xf32>
    %20 = vector.broadcast %19 : vector<8x1xf32> to vector<8x4xf32>
    %21 = arith.mulf %16, %20 : vector<8x4xf32>
    %22 = arith.addf %1, %21 : vector<8x4xf32>
    %c1 = arith.constant 1 : index
    %c0_13 = arith.constant 0 : index
    %c0_14 = arith.constant 0 : index
    %23 = vector.load %arg1[%c1, %c0_13, %c0_14] : memref<2x8x32xf32, #tpu.memory_space<vmem>>, vector<1x8x32xf32>
    %24 = vector.shape_cast %23 : vector<1x8x32xf32> to vector<8x32xf32>
    %c0_15 = arith.constant 0 : index
    %c0_16 = arith.constant 0 : index
    %25 = vector.load %arg2[%c0_15, %c0_16] : memref<32x32xf32, #tpu.memory_space<vmem>>, vector<32x32xf32>
    %cst_17 = arith.constant dense<0.000000e+00> : vector<8x32xf32>
    %26 = tpu.matmul %24, %25, %cst_17 {dimension_numbers = #tpu.dot_dimension_numbers<[1], [0], [0], [1], [0, 0, 1, 1], [], []>} : vector<8x32xf32>, vector<32x32xf32>, vector<8x32xf32> -> vector<8x32xf32>
    %c0_18 = arith.constant 0 : index
    %c0_19 = arith.constant 0 : index
    %27 = vector.load %arg3[%c0_18, %c0_19] : memref<1x32xf32, #tpu.memory_space<vmem>>, vector<1x32xf32>
    %28 = vector.broadcast %27 : vector<1x32xf32> to vector<8x32xf32>
    %29 = arith.addf %26, %28 : vector<8x32xf32>
    %cst_20 = arith.constant dense<0.000000e+00> : vector<8x4xf32>
    %30 = tpu.matmul %29, %0, %cst_20 {dimension_numbers = #tpu.dot_dimension_numbers<[1], [1], [0], [0], [0, 0, 1, 0], [], []>} : vector<8x32xf32>, vector<4x32xf32>, vector<8x4xf32> -> vector<8x4xf32>
    %cst_21 = arith.constant 0.176776692 : f32
    %31 = vector.broadcast %cst_21 : f32 to vector<8x4xf32>
    %32 = arith.mulf %30, %31 : vector<8x4xf32>
    %cst_22 = arith.constant dense<0xFF800000> : vector<8xf32>
    %33 = vector.multi_reduction <maximumf>, %32, %cst_22 [1] : vector<8x4xf32> to vector<8xf32>
    %34 = vector.shape_cast %33 : vector<8xf32> to vector<8x1xf32>
    %35 = vector.broadcast %34 : vector<8x1xf32> to vector<8x4xf32>
    %36 = arith.subf %32, %35 : vector<8x4xf32>
    %37 = math.exp %36 : vector<8x4xf32>
    %cst_23 = arith.constant dense<0.000000e+00> : vector<8xf32>
    %38 = vector.multi_reduction <add>, %37, %cst_23 [1] : vector<8x4xf32> to vector<8xf32>
    %39 = vector.shape_cast %38 : vector<8xf32> to vector<8x1xf32>
    %40 = tpu.reciprocal %39 {approx = true} : vector<8x1xf32> -> vector<8x1xf32>
    %41 = vector.broadcast %40 : vector<8x1xf32> to vector<8x4xf32>
    %42 = arith.mulf %37, %41 : vector<8x4xf32>
    %43 = arith.addf %22, %42 : vector<8x4xf32>
    %cst_24 = arith.constant 5.000000e-01 : f32
    %44 = vector.broadcast %cst_24 : f32 to vector<8x4xf32>
    %45 = arith.mulf %43, %44 : vector<8x4xf32>
    %c0_25 = arith.constant 0 : index
    %c0_26 = arith.constant 0 : index
    %46 = vector.load %arg5[%c0_25, %c0_26] : memref<8x4xf32, #tpu.memory_space<vmem>>, vector<8x4xf32>
    tpu.vector_store %arg5[%c0_25, %c0_26], %45 {strides = array<i32>} : memref<8x4xf32, #tpu.memory_space<vmem>>, vector<8x4xf32>,
    return
  }
  func.func @transform_0(%arg0: i32) -> (i32, i32, i32) {
    %c0_i32 = arith.constant 0 : i32
    %c0_i32_0 = arith.constant 0 : i32
    %c0_i32_1 = arith.constant 0 : i32
    %c0_i32_2 = arith.constant 0 : i32
    return %c0_i32, %c0_i32_0, %c0_i32_1 : i32, i32, i32
  }
  func.func @transform_1(%arg0: i32) -> (i32, i32) {
    %c0_i32 = arith.constant 0 : i32
    %c0_i32_0 = arith.constant 0 : i32
    %c0_i32_1 = arith.constant 0 : i32
    return %c0_i32, %c0_i32_0 : i32, i32
  }
  func.func @transform_2(%arg0: i32) -> (i32, i32) {
    %c0_i32 = arith.constant 0 : i32
    %c0_i32_0 = arith.constant 0 : i32
    %c0_i32_1 = arith.constant 0 : i32
    return %c0_i32, %c0_i32_0 : i32, i32
  }
  func.func @transform_3(%arg0: i32) -> (i32, i32) {
    %c0_i32 = arith.constant 0 : i32
    %c0_i32_0 = arith.constant 0 : i32
    %c0_i32_1 = arith.constant 0 : i32
    return %c0_i32, %c0_i32_0 : i32, i32
  }
  func.func @transform_4(%arg0: i32) -> (i32, i32) {
    %c0_i32 = arith.constant 0 : i32
    %c0_i32_0 = arith.constant 0 : i32
    %c0_i32_1 = arith.constant 0 : i32
    return %c0_i32, %c0_i32_0 : i32, i32
  }
}

</mosaic_0001>

<llo_original>
// kernel: tpu_custom_call.1
$region0: #{tpu_custom_call.1}
  #allocation0 [shape = 'u32[]', space=smem, size = 0x4, offset = 0x4, fixed_abs, tag = 'smem constant byte address 0x4 - core index']
  #allocation1 [shape = 'u32[72,128]{1,0:T(1,128)}', space=vmem, size = 0x9000, scoped, tag = 'internal scratch']
  %s0 = inlined_call_operand.hbm [shape: f32[2,8,32], index: 0, kind: input, shape index: {}]
  %s1 = inlined_call_operand.hbm [shape: f32[32,32], index: 1, kind: input, shape index: {}]
  %s2 = inlined_call_operand.vmem [shape: f32[1,32], index: 2, kind: input, shape index: {}]
  %s3 = inlined_call_operand.hbm [shape: f32[4,32], index: 3, kind: input, shape index: {}]
  %s4 = inlined_call_operand.vmem [shape: f32[8,4], index: 4, kind: output, shape index: {}]
  %s5 = sld [smem:[#allocation0]]
  $region38: #{tpu_custom_call.1} parent=0
    _
  %s7 = ssub.s32 1, %s5
  %s8 = scalar_select 0, %s7, %s5
  $region1: #{tpu_custom_call.1} parent=0
    #allocation2 [shape = 'u8[8192]{0}', space=vmem, size = 0x2000, scoped, tag = 'input window, operand 0, single buffered']
    #allocation3 [shape = 's32[1]{0}', space=sflag, size = 0x4, scoped, tag = 'scoped memory for tpu_custom_call.1']
    #allocation4 [shape = 'u8[16384]{0}', space=vmem, size = 0x4000, scoped, tag = 'input window, operand 1, single buffered']
    #allocation5 [shape = 's32[1]{0}', space=sflag, size = 0x4, scoped, tag = 'scoped memory for tpu_custom_call.1']
    #allocation6 [shape = 'u8[2048]{0}', space=vmem, size = 0x800, scoped, tag = 'input window, operand 3, single buffered']
    %9 = vsyncpa [#allocation3], 0
    %10 = vsyncpa [#allocation5], 0
    // Predicated region
    $region2: #{tpu_custom_call.1} parent=1 // pred_check
      _
    $region3: #{tpu_custom_call.1} parent=1 // pred_check_branch
      %12 = sbr.rel (0) target = $region5
    $region4: #{tpu_custom_call.1} parent=1 // pred_region
      %14 = vsyncadd [#allocation3], 0
      %s15 = sshll.u32 %s0, 4
      %s16 = int_to_ptr.hbm [resolvable:$true] %s15
      %s17 = sshll.u32 [#allocation2], 4
      %s18 = int_to_ptr.vmem [resolvable:$true] %s17
      %23 = dma.hbm_to_vmem [thread:$0]  %s16, 256, %s18, [#allocation3], 128, 128, 8
    $region5: #{tpu_custom_call.1} parent=1 // pred_fallthru
      _
    // Predicated region
    $region6: #{tpu_custom_call.1} parent=1 // pred_check
      _
    $region7: #{tpu_custom_call.1} parent=1 // pred_check_branch
      %25 = sbr.rel (0) target = $region9
    $region8: #{tpu_custom_call.1} parent=1 // pred_region
      %27 = vsyncadd [#allocation5], 0
      %s28 = sshll.u32 %s1, 4
      %s29 = int_to_ptr.hbm [resolvable:$true] %s28
      %s30 = sshll.u32 [#allocation4], 4
      %s31 = int_to_ptr.vmem [resolvable:$true] %s30
      %36 = dma.hbm_to_vmem [thread:$0]  %s29, 512, %s31, [#allocation5], 128, 128, 8
    $region9: #{tpu_custom_call.1} parent=1 // pred_fallthru
      _
    // Predicated region
    $region10: #{tpu_custom_call.1} parent=1 // pred_check
      _
    $region11: #{tpu_custom_call.1} parent=1 // pred_check_branch
      %38 = sbr.rel (0) target = $region13
    $region12: #{tpu_custom_call.1} parent=1 // pred_region
      _
    $region13: #{tpu_custom_call.1} parent=1 // pred_fallthru
      _
    // Predicated region
    $region14: #{tpu_custom_call.1} parent=1 // pred_check
      _
    $region15: #{tpu_custom_call.1} parent=1 // pred_check_branch
      %40 = sbr.rel (0) target = $region17
    $region16: #{tpu_custom_call.1} parent=1 // pred_region
      %42 = vsyncadd [#allocation5], 0
      %s44 = sshll.u32 %s3, 4
      %s45 = int_to_ptr.hbm [resolvable:$true] %s44
      %s46 = sshll.u32 [#allocation6], 4
      %s47 = int_to_ptr.vmem [resolvable:$true] %s46
      %49 = dma.hbm_to_vmem [thread:$0]  %s45, 64, %s47, [#allocation5]
    $region17: #{tpu_custom_call.1} parent=1 // pred_fallthru
      _
    // Predicated region
    $region18: #{tpu_custom_call.1} parent=1 // pred_check
      _
    $region19: #{tpu_custom_call.1} parent=1 // pred_check_branch
      %51 = sbr.rel (0) target = $region21
    $region20: #{tpu_custom_call.1} parent=1 // pred_region
      %53 = dma.done [#allocation3], 256
    $region21: #{tpu_custom_call.1} parent=1 // pred_fallthru
      _
    // Predicated region
    $region22: #{tpu_custom_call.1} parent=1 // pred_check
      _
    $region23: #{tpu_custom_call.1} parent=1 // pred_check_branch
      %55 = sbr.rel (0) target = $region25
    $region24: #{tpu_custom_call.1} parent=1 // pred_region
      %57 = dma.done [#allocation5], 512
    $region25: #{tpu_custom_call.1} parent=1 // pred_fallthru
      _
    // Predicated region
    $region26: #{tpu_custom_call.1} parent=1 // pred_check
      _
    $region27: #{tpu_custom_call.1} parent=1 // pred_check_branch
      %59 = sbr.rel (0) target = $region29
    $region28: #{tpu_custom_call.1} parent=1 // pred_region
      %61 = dma.done [#allocation5], 64
    $region29: #{tpu_custom_call.1} parent=1 // pred_fallthru
      _
    %v62 = vld [vmem:[#allocation6] sm:$0xf]
    %v63 = vld [vmem:[#allocation2] sm:$0xff]
    %v64 = vld [vmem:[#allocation4] sm:$0xff]
    %v65 = vld [vmem:[#allocation4 + $0x8] sm:$0xff]
    %v66 = vld [vmem:[#allocation4 + $0x10] sm:$0xff]
    %v67 = vld [vmem:[#allocation4 + $0x18] sm:$0xff]
    %v68 = vld [vmem:[%s2] sm:$0x1]
    %v70 = vperm.slane %v68, 0
    %vm72 = vcmask 261120
    %v74 = vsel %vm72, %v63, 0
    %76 = vmatpush.msra.mxu0 0.0
    %77 = vmatpush.msra.mxu0 0.0
    %78 = vmatpush.msra.mxu0 0.0
    %79 = vmatpush.msra.mxu0 0.0
    %80 = vmatpush.msra.mxu0 0.0
    %81 = vmatpush.msra.mxu0 0.0
    %82 = vmatpush.msra.mxu0 0.0
    %83 = vmatpush.msra.mxu0 0.0
    %84 = vmatpush.msra.mxu0 0.0
    %85 = vmatpush.msra.mxu0 0.0
    %86 = vmatpush.msra.mxu0 0.0
    %87 = vmatpush.msra.mxu0 0.0
    %88 = vmatpush.msra.mxu0 %v67
    %89 = vmatpush.msra.mxu0 %v66
    %90 = vmatpush.msra.mxu0 %v65
    %91 = vmatpush.msra.mxu0 %v64
    %92 = vmatmul.f32.gmra.mxu0 %v74
    %v93 = vpop.f32.mrf.mxu0
    %v94 = vadd.f32 %v70, %v93
    %95 = vdwg.mxu0
    %v97 = vsel %vm72, %v94, 0
    %v100 = vsel %vm72, %v62, 0
    %102 = vmatpush.xpose.msra.mxu0 0.0
    %103 = vmatpush.xpose.msra.mxu0 0.0
    %104 = vmatpush.xpose.msra.mxu0 0.0
    %105 = vmatpush.xpose.msra.mxu0 0.0
    %106 = vmatpush.xpose.msra.mxu0 0.0
    %107 = vmatpush.xpose.msra.mxu0 0.0
    %108 = vmatpush.xpose.msra.mxu0 0.0
    %109 = vmatpush.xpose.msra.mxu0 0.0
    %110 = vmatpush.xpose.msra.mxu0 0.0
    %111 = vmatpush.xpose.msra.mxu0 0.0
    %112 = vmatpush.xpose.msra.mxu0 0.0
    %113 = vmatpush.xpose.msra.mxu0 0.0
    %114 = vmatpush.xpose.msra.mxu0 0.0
    %115 = vmatpush.xpose.msra.mxu0 0.0
    %116 = vmatpush.xpose.msra.mxu0 0.0
    %117 = vmatpush.xpose.msra.mxu0 %v100
    %118 = vmatmul.f32.gmra.mxu0 %v97
    %v119 = vpop.f32.mrf.mxu0
    %v120 = vadd.f32 0.0, %v119
    %121 = vdwg.mxu0
    %v122 = vmul.f32 %v120, 0.17677669
    %vm123 = vcmask 31744
    %v124 = vsel %vm123, %v122, -inf
    %125 = vmax.xlane.f32.xlu0 %v124
    %v126 = vpop.xlane.xlu0 %125
    %v127 = vsub.f32 %v122, %v126
    %v128 = vmul.f32 %v127, 1.442695
    %v129 = vpow.pop %v128
    %v130 = vsel %vm123, %v129, 0.0
    %131 = vadd.xlane.f32.xlu0 %v130
    %v132 = vpop.xlane.xlu0 %131
    %v133 = vrcp.pop %v132
    %v134 = vmul.f32 %v129, %v133
    %v135 = vadd.f32 %v134, 0.0
    %s136 = scalar_lea.vmem [#allocation2], 8
    %v137 = vld [vmem:[%s136] sm:$0xff]
    %v139 = vsel %vm72, %v137, 0
    %141 = vmatpush.msra.mxu0 0.0
    %142 = vmatpush.msra.mxu0 0.0
    %143 = vmatpush.msra.mxu0 0.0
    %144 = vmatpush.msra.mxu0 0.0
    %145 = vmatpush.msra.mxu0 0.0
    %146 = vmatpush.msra.mxu0 0.0
    %147 = vmatpush.msra.mxu0 0.0
    %148 = vmatpush.msra.mxu0 0.0
    %149 = vmatpush.msra.mxu0 0.0
    %150 = vmatpush.msra.mxu0 0.0
    %151 = vmatpush.msra.mxu0 0.0
    %152 = vmatpush.msra.mxu0 0.0
    %153 = vmatpush.msra.mxu0 %v67
    %154 = vmatpush.msra.mxu0 %v66
    %155 = vmatpush.msra.mxu0 %v65
    %156 = vmatpush.msra.mxu0 %v64
    %157 = vmatmul.f32.gmra.mxu0 %v139
    %v158 = vpop.f32.mrf.mxu0
    %v159 = vadd.f32 %v70, %v158
    %160 = vdwg.mxu0
    %v162 = vsel %vm72, %v159, 0
    %164 = vmatpush.xpose.msra.mxu0 0.0
    %165 = vmatpush.xpose.msra.mxu0 0.0
    %166 = vmatpush.xpose.msra.mxu0 0.0
    %167 = vmatpush.xpose.msra.mxu0 0.0
    %168 = vmatpush.xpose.msra.mxu0 0.0
    %169 = vmatpush.xpose.msra.mxu0 0.0
    %170 = vmatpush.xpose.msra.mxu0 0.0
    %171 = vmatpush.xpose.msra.mxu0 0.0
    %172 = vmatpush.xpose.msra.mxu0 0.0
    %173 = vmatpush.xpose.msra.mxu0 0.0
    %174 = vmatpush.xpose.msra.mxu0 0.0
    %175 = vmatpush.xpose.msra.mxu0 0.0
    %176 = vmatpush.xpose.msra.mxu0 0.0
    %177 = vmatpush.xpose.msra.mxu0 0.0
    %178 = vmatpush.xpose.msra.mxu0 0.0
    %179 = vmatpush.xpose.msra.mxu0 %v100
    %180 = vmatmul.f32.gmra.mxu0 %v162
    %v181 = vpop.f32.mrf.mxu0
    %v182 = vadd.f32 0.0, %v181
    %183 = vdwg.mxu0
    %v184 = vmul.f32 %v182, 0.17677669
    %v185 = vsel %vm123, %v184, -inf
    %186 = vmax.xlane.f32.xlu0 %v185
    %v187 = vpop.xlane.xlu0 %186
    %v188 = vsub.f32 %v184, %v187
    %v189 = vmul.f32 %v188, 1.442695
    %v190 = vpow.pop %v189
    %v191 = vsel %vm123, %v190, 0.0
    %192 = vadd.xlane.f32.xlu0 %v191
    %v193 = vpop.xlane.xlu0 %192
    %v194 = vrcp.pop %v193
    %v195 = vmul.f32 %v190, %v194
    %v196 = vadd.f32 %v135, %v195
    %v197 = vmul.f32 %v196, 0.5
    %198 = vst.msk [vmem:[%s4] sm:$0xff] %vm123, %v197
    // Predicated region
    $region30: #{tpu_custom_call.1} parent=1 // pred_check
      _
    $region31: #{tpu_custom_call.1} parent=1 // pred_check_branch
      %200 = sbr.rel (0) target = $region33
    $region32: #{tpu_custom_call.1} parent=1 // pred_region
      _
    $region33: #{tpu_custom_call.1} parent=1 // pred_fallthru
      _
    // Predicated region
    $region34: #{tpu_custom_call.1} parent=1 // pred_check
      _
    $region35: #{tpu_custom_call.1} parent=1 // pred_check_branch
      %202 = sbr.rel (0) target = $region37
    $region36: #{tpu_custom_call.1} parent=1 // pred_region
      _
    $region37: #{tpu_custom_call.1} parent=1 // pred_fallthru
      _
    %203 = vsyncpa [#allocation3], 1
    %204 = vsyncpa [#allocation5], 1

</llo_original>
